<compile_context>
chip_gen: v6e
topology: v6e:2x2x1
jax: 0.10.0
libtpu: 0.0.40
codegen_flags: <defaults>
</compile_context>

<pallas_src>
import jax
import jax.numpy as jnp
from jax.experimental import pallas as pl
from jax.experimental.pallas import tpu as pltpu


def _temporal_kernel(x_ref, h_ref, xhid_ref, wxh_ref, bh_ref, wo_ref, bo_ref,
                     *out_refs):
    """One row-tile of the fused TemporalLayer forward.

    Stage 1 (x_proj + h_proj fused): h_new = [x | h] @ [Wx^T ; Wh^T] + (bx + bh)
    Stage 2 (out_proj fused halves): out   = ReLU([x_hidden | h_new] @ [Wo1^T ; Wo2^T] + bo)

    Operands are cast to the weights' (compute) dtype per tile; accumulation is f32.
    NOTE: on the bf16 compute path h_new is re-rounded to bf16 before the stage-2 dot,
    while the stored h_new is the un-rounded f32 accumulator cast to the output dtype.
    """
    cd = wxh_ref.dtype  # compute dtype for MXU operands

    xh = jnp.concatenate([x_ref[...].astype(cd), h_ref[...].astype(cd)], axis=-1)
    h_new = (jnp.dot(xh, wxh_ref[...], preferred_element_type=jnp.float32)
             + bh_ref[...])

    total = jnp.concatenate([xhid_ref[...].astype(cd), h_new.astype(cd)], axis=-1)
    pre = (jnp.dot(total, wo_ref[...], preferred_element_type=jnp.float32)
           + bo_ref[...])
    out = jnp.maximum(pre, 0.0)

    if len(out_refs) == 1:
        # Narrow outputs (<128 lanes): one lane-dense slab [h_new | out] -> single
        # wide store instead of two narrow masked stores.
        comb_ref, = out_refs
        comb_ref[...] = jnp.concatenate([h_new, out], axis=-1).astype(comb_ref.dtype)
    else:
        # 128-aligned outputs: two separate unmasked stores, no wrapper split.
        hnew_ref, o_ref = out_refs
        hnew_ref[...] = h_new.astype(hnew_ref.dtype)
        o_ref[...] = out.astype(o_ref.dtype)


def _vmem_capacity_bytes():
    try:
        return int(pltpu.get_tpu_info().vmem_capacity_bytes)
    except Exception:
        return 64 * 1024 * 1024  # conservative default (v7x per-TC VMEM)


def temporal_layer(x, x_hidden, h, params, *, tm=None, compute_dtype=None,
                   single_buffer_weights=True):
    """x: (B,T,Din), x_hidden: (B,T,H), h: (B,T,H).

    Returns (output (B,T,Dout), h_new (B,T,H)) in x.dtype.  Matmul accumulation is
    always f32; `compute_dtype=jnp.bfloat16` casts operands per-tile in VMEM for the
    bf16-native MXU path.  Feeding bf16 activations end-to-end halves HBM traffic.
    """
    B, T, Din = x.shape
    H = h.shape[-1]
    wxh_t, bh, wo_t, bo = params
    Dout = wo_t.shape[-1]
    out_dtype = x.dtype
    cd = jnp.dtype(compute_dtype) if compute_dtype is not None else jnp.dtype(x.dtype)

    M = B * T
    # Free reshapes only — no HBM round trips for the activations.
    x2 = x.reshape(M, Din)
    h2 = h.reshape(M, H)
    xhid2 = x_hidden.reshape(M, H)

    # Weights are tiny: cast once in the wrapper.  Biases stay f32 (f32 accumulation).
    wxh = wxh_t.astype(cd)        # (Din+H, H)
    wo = wo_t.astype(cd)          # (2H, Dout)
    bh_f = bh.astype(jnp.float32)     # (1, H)
    bo_f = bo.astype(jnp.float32)     # (1, Dout)

    # ---- generation-aware row tiling ---------------------------------------------
    vmem_cap = _vmem_capacity_bytes()
    big_vmem = vmem_cap >= 96 * 1024 * 1024          # v5e / v6e (128 MiB VMEM)
    pack = max(8, 32 // max(1, cd.itemsize))          # sublane packing: 8 f32, 16 bf16
    if tm is None:
        row_target = 1024 if big_vmem else 512        # bigger tiles amortize per-step cost
        n_steps = max(4, pl.cdiv(M, row_target))      # >=4 steps: dual-TC + pipelining
        tm = pl.cdiv(M, n_steps)
        align = 256 if tm >= 256 else pack            # 256-row LHS feeds the MXU cleanly
        tm = pl.cdiv(tm, align) * align
    tm = max(pack, pl.cdiv(tm, pack) * pack)          # sublane-pack alignment
    tm = min(tm, pl.cdiv(M, pack) * pack)             # never larger than (padded) M
    grid = (pl.cdiv(M, tm),)                          # last tile may hang past M: reads
                                                      # there are ignored, writes masked.

    in_itemsize = jnp.dtype(x.dtype).itemsize
    out_itemsize = jnp.dtype(out_dtype).itemsize
    w_bytes = ((Din + H) * H + 2 * H * Dout) * cd.itemsize + (H + Dout) * 4
    act_bytes = 2 * tm * (Din + 2 * H) * in_itemsize          # double-buffered inputs
    out_tile_bytes = 2 * tm * (H + Dout) * out_itemsize       # double-buffered output
    w_buf = 1 if single_buffer_weights else 2
    est = act_bytes + w_buf * w_bytes + out_tile_bytes + (2 << 20)
    vmem_limit = int(min(max(2 * est, 32 * 1024 * 1024), 0.75 * vmem_cap))

    flops = 2 * M * (Din + H) * H + 2 * M * (2 * H) * Dout
    bytes_accessed = (M * (Din + 2 * H) * in_itemsize
                      + w_bytes
                      + M * (H + Dout) * out_itemsize)
    cost = pl.CostEstimate(flops=flops, transcendentals=0,
                           bytes_accessed=bytes_accessed)

    split_out = (H % 128 == 0) and (Dout % 128 == 0)

    def row_spec(F):
        return pl.BlockSpec((tm, F), lambda i: (i, 0))

    def const_spec(arr, single_buffer):
        idx = lambda i: (0, 0)
        if single_buffer:
            # Constant-index block: single buffering halves resident weight VMEM.
            return pl.BlockSpec(arr.shape, idx, pipeline_mode=pl.Buffered(1))
        return pl.BlockSpec(arr.shape, idx)

    def build(single_buffer):
        in_specs = [
            row_spec(Din),                       # x        (tm, Din)
            row_spec(H),                         # h        (tm, H)
            row_spec(H),                         # x_hidden (tm, H)
            const_spec(wxh, single_buffer),      # [Wx^T ; Wh^T]   (Din+H, H)
            const_spec(bh_f, single_buffer),     # bx + bh         (1, H)
            const_spec(wo, single_buffer),       # [Wo1^T ; Wo2^T] (2H, Dout)
            const_spec(bo_f, single_buffer),     # bo              (1, Dout)
        ]
        if split_out:
            out_shape = (jax.ShapeDtypeStruct((M, H), out_dtype),
                         jax.ShapeDtypeStruct((M, Dout), out_dtype))
            out_specs = (row_spec(H), row_spec(Dout))
        else:
            out_shape = jax.ShapeDtypeStruct((M, H + Dout), out_dtype)
            out_specs = row_spec(H + Dout)
        return pl.pallas_call(
            _temporal_kernel,
            out_shape=out_shape,
            grid_spec=pltpu.PrefetchScalarGridSpec(
                num_scalar_prefetch=0,
                grid=grid,
                in_specs=in_specs,
                out_specs=out_specs),
            compiler_params=pltpu.CompilerParams(
                dimension_semantics=("parallel",),
                vmem_limit_bytes=vmem_limit),
            cost_estimate=cost,
        )

    args = (x2, h2, xhid2, wxh, bh_f, wo, bo_f)
    if single_buffer_weights:
        try:
            res = build(True)(*args)
        except Exception:
            # Older JAX without pipeline_mode / Buffered(1) support: double-buffered
            # weight blocks (still correct, slightly more VMEM).
            res = build(False)(*args)
    else:
        res = build(False)(*args)

    if split_out:
        hnew2, out2 = res
        h_new = hnew2.reshape(B, T, H)
        out = out2.reshape(B, T, Dout)
    else:
        comb = res
        h_new = comb[:, :H].reshape(B, T, H)
        out = comb[:, H:].reshape(B, T, Dout)
    return out, h_new


def init_params(key, input_dim, hidden_dim, output_dim, dtype=jnp.float32):
    """PyTorch nn.Linear stores weight as (out, in); we pre-transpose to (in, out),
    fuse x_proj/h_proj into one (Din+H, H) weight + one bias, and stack out_proj as
    a single (2H, Dout) weight (rows = [x_hidden-half ; h_new-half])."""
    ks = jax.random.split(key, 6)
    wx = jax.random.normal(ks[0], (hidden_dim, input_dim), dtype) * 0.1
    bx = jax.random.normal(ks[1], (hidden_dim,), dtype) * 0.1
    wh = jax.random.normal(ks[2], (hidden_dim, hidden_dim), dtype) * 0.1
    bh = jax.random.normal(ks[3], (hidden_dim,), dtype) * 0.1
    wo = jax.random.normal(ks[4], (output_dim, 2 * hidden_dim), dtype) * 0.1
    bo = jax.random.normal(ks[5], (output_dim,), dtype) * 0.1
    wxh_t = jnp.concatenate([wx.T, wh.T], axis=0)      # (Din+H, H)
    b_fused = (bx + bh).reshape(1, -1)                 # (1, H)
    wo_t = wo.T                                        # (2H, Dout)
    return (wxh_t, b_fused, wo_t, bo.reshape(1, -1))


def reference(x, x_hidden, h, params):
    wxh_t, bh, wo_t, bo = params
    h_new = jnp.concatenate([x, h], axis=-1) @ wxh_t + bh
    total = jnp.concatenate([x_hidden, h_new], axis=-1)
    out = jax.nn.relu(total @ wo_t + bo)
    return out, h_new


if __name__ == "__main__":
    key = jax.random.PRNGKey(0)

    def run_case(B, T, Din, H, Dout, *, compute_dtype=None, tol=2e-4):
        k1, k2, k3, kp = jax.random.split(jax.random.fold_in(key, 1000 * H + Dout), 4)
        x = jax.random.normal(k1, (B, T, Din), jnp.float32)
        x_hidden = jax.random.normal(k2, (B, T, H), jnp.float32)
        h = jax.random.normal(k3, (B, T, H), jnp.float32)
        params = init_params(kp, Din, H, Dout)

        out_ref, h_new_ref = reference(x, x_hidden, h, params)
        out, h_new = temporal_layer(x, x_hidden, h, params, compute_dtype=compute_dtype)
        jax.block_until_ready((out, h_new))

        assert out.shape == (B, T, Dout) and h_new.shape == (B, T, H)
        assert jnp.allclose(out, out_ref, atol=tol, rtol=tol), "output mismatch"
        assert jnp.allclose(h_new, h_new_ref, atol=tol, rtol=tol), "h_new mismatch"

    # f32 path, narrow outputs -> single lane-dense slab, 2-step row grid.
    run_case(2, 8, 32, 32, 16, tol=2e-4)
    # bf16 compute path (f32 accumulation), pack-aligned tiles, 4-step row grid.
    run_case(2, 64, 32, 32, 16, compute_dtype=jnp.bfloat16, tol=5e-2)
    # 128-aligned outputs -> split h_new / out stores (no wrapper slab split).
    run_case(2, 8, 32, 128, 128, tol=2e-4)

    print("KERNEL_OK")
</pallas_src>

<mosaic_0001>
module attributes {stable_mosaic.version = 11 : i64} {
  func.func @_temporal_kernel(%arg0: i32, %arg1: memref<8x32xf32, #tpu.memory_space<vmem>>, %arg2: memref<8x32xf32, #tpu.memory_space<vmem>>, %arg3: memref<8x32xf32, #tpu.memory_space<vmem>>, %arg4: memref<64x32xf32, #tpu.memory_space<vmem>>, %arg5: memref<1x32xf32, #tpu.memory_space<vmem>>, %arg6: memref<64x16xf32, #tpu.memory_space<vmem>>, %arg7: memref<1x16xf32, #tpu.memory_space<vmem>>, %arg8: memref<8x48xf32, #tpu.memory_space<vmem>>) attributes {dimension_semantics = [#tpu.dimension_semantics<parallel>], iteration_bounds = array<i64: 2>, scalar_prefetch = 0 : i64, scratch_operands = 0 : i64, tpu.core_type = #tpu.core_type<tc>, window_params = [{transform_indices = @transform_0, window_bounds = array<i64: 8, 32>}, {transform_indices = @transform_1, window_bounds = array<i64: 8, 32>}, {transform_indices = @transform_2, window_bounds = array<i64: 8, 32>}, {pipeline_mode = #tpu.pipeline_mode<synchronous>, transform_indices = @transform_3, window_bounds = array<i64: 64, 32>}, {pipeline_mode = #tpu.pipeline_mode<synchronous>, transform_indices = @transform_4, window_bounds = array<i64: 1, 32>}, {pipeline_mode = #tpu.pipeline_mode<synchronous>, transform_indices = @transform_5, window_bounds = array<i64: 64, 16>}, {pipeline_mode = #tpu.pipeline_mode<synchronous>, transform_indices = @transform_6, window_bounds = array<i64: 1, 16>}, {transform_indices = @transform_7, window_bounds = array<i64: 8, 48>}]} {
    %c0 = arith.constant 0 : index
    %c0_0 = arith.constant 0 : index
    %0 = vector.load %arg1[%c0, %c0_0] : memref<8x32xf32, #tpu.memory_space<vmem>>, vector<8x32xf32>
    %c0_1 = arith.constant 0 : index
    %c0_2 = arith.constant 0 : index
    %1 = vector.load %arg2[%c0_1, %c0_2] : memref<8x32xf32, #tpu.memory_space<vmem>>, vector<8x32xf32>
    %2 = tpu.concatenate %0, %1 in 1 : vector<8x32xf32>, vector<8x32xf32> -> vector<8x64xf32>
    %c0_3 = arith.constant 0 : index
    %c0_4 = arith.constant 0 : index
    %3 = vector.load %arg4[%c0_3, %c0_4] : memref<64x32xf32, #tpu.memory_space<vmem>>, vector<64x32xf32>
    %cst = arith.constant dense<0.000000e+00> : vector<8x32xf32>
    %4 = tpu.matmul %2, %3, %cst {dimension_numbers = #tpu.dot_dimension_numbers<[1], [0], [0], [1], [0, 0, 1, 1], [], []>} : vector<8x64xf32>, vector<64x32xf32>, vector<8x32xf32> -> vector<8x32xf32>
    %c0_5 = arith.constant 0 : index
    %c0_6 = arith.constant 0 : index
    %5 = vector.load %arg5[%c0_5, %c0_6] : memref<1x32xf32, #tpu.memory_space<vmem>>, vector<1x32xf32>
    %6 = vector.broadcast %5 : vector<1x32xf32> to vector<8x32xf32>
    %7 = arith.addf %4, %6 : vector<8x32xf32>
    %c0_7 = arith.constant 0 : index
    %c0_8 = arith.constant 0 : index
    %8 = vector.load %arg3[%c0_7, %c0_8] : memref<8x32xf32, #tpu.memory_space<vmem>>, vector<8x32xf32>
    %9 = tpu.concatenate %8, %7 in 1 : vector<8x32xf32>, vector<8x32xf32> -> vector<8x64xf32>
    %c0_9 = arith.constant 0 : index
    %c0_10 = arith.constant 0 : index
    %10 = vector.load %arg6[%c0_9, %c0_10] : memref<64x16xf32, #tpu.memory_space<vmem>>, vector<64x16xf32>
    %cst_11 = arith.constant dense<0.000000e+00> : vector<8x16xf32>
    %11 = tpu.matmul %9, %10, %cst_11 {dimension_numbers = #tpu.dot_dimension_numbers<[1], [0], [0], [1], [0, 0, 1, 1], [], []>} : vector<8x64xf32>, vector<64x16xf32>, vector<8x16xf32> -> vector<8x16xf32>
    %c0_12 = arith.constant 0 : index
    %c0_13 = arith.constant 0 : index
    %12 = vector.load %arg7[%c0_12, %c0_13] : memref<1x16xf32, #tpu.memory_space<vmem>>, vector<1x16xf32>
    %13 = vector.broadcast %12 : vector<1x16xf32> to vector<8x16xf32>
    %14 = arith.addf %11, %13 : vector<8x16xf32>
    %cst_14 = arith.constant 0.000000e+00 : f32
    %15 = vector.broadcast %cst_14 : f32 to vector<8x16xf32>
    %16 = arith.maximumf %14, %15 : vector<8x16xf32>
    %17 = tpu.concatenate %7, %16 in 1 : vector<8x32xf32>, vector<8x16xf32> -> vector<8x48xf32>
    %c0_15 = arith.constant 0 : index
    %c0_16 = arith.constant 0 : index
    %18 = vector.load %arg8[%c0_15, %c0_16] : memref<8x48xf32, #tpu.memory_space<vmem>>, vector<8x48xf32>
    tpu.vector_store %arg8[%c0_15, %c0_16], %17 {strides = array<i32>} : memref<8x48xf32, #tpu.memory_space<vmem>>, vector<8x48xf32>,
    return
  }
  func.func @transform_0(%arg0: i32) -> (i32, i32) {
    %c0_i32 = arith.constant 0 : i32
    %c0_i32_0 = arith.constant 0 : i32
    return %arg0, %c0_i32 : i32, i32
  }
  func.func @transform_1(%arg0: i32) -> (i32, i32) {
    %c0_i32 = arith.constant 0 : i32
    %c0_i32_0 = arith.constant 0 : i32
    return %arg0, %c0_i32 : i32, i32
  }
  func.func @transform_2(%arg0: i32) -> (i32, i32) {
    %c0_i32 = arith.constant 0 : i32
    %c0_i32_0 = arith.constant 0 : i32
    return %arg0, %c0_i32 : i32, i32
  }
  func.func @transform_3(%arg0: i32) -> (i32, i32) {
    %c0_i32 = arith.constant 0 : i32
    %c0_i32_0 = arith.constant 0 : i32
    %c0_i32_1 = arith.constant 0 : i32
    return %c0_i32, %c0_i32_0 : i32, i32
  }
  func.func @transform_4(%arg0: i32) -> (i32, i32) {
    %c0_i32 = arith.constant 0 : i32
    %c0_i32_0 = arith.constant 0 : i32
    %c0_i32_1 = arith.constant 0 : i32
    return %c0_i32, %c0_i32_0 : i32, i32
  }
  func.func @transform_5(%arg0: i32) -> (i32, i32) {
    %c0_i32 = arith.constant 0 : i32
    %c0_i32_0 = arith.constant 0 : i32
    %c0_i32_1 = arith.constant 0 : i32
    return %c0_i32, %c0_i32_0 : i32, i32
  }
  func.func @transform_6(%arg0: i32) -> (i32, i32) {
    %c0_i32 = arith.constant 0 : i32
    %c0_i32_0 = arith.constant 0 : i32
    %c0_i32_1 = arith.constant 0 : i32
    return %c0_i32, %c0_i32_0 : i32, i32
  }
  func.func @transform_7(%arg0: i32) -> (i32, i32) {
    %c0_i32 = arith.constant 0 : i32
    %c0_i32_0 = arith.constant 0 : i32
    return %arg0, %c0_i32 : i32, i32
  }
}

module attributes {stable_mosaic.version = 11 : i64} {
  func.func @_temporal_kernel(%arg0: i32, %arg1: memref<8x32xf32, #tpu.memory_space<vmem>>, %arg2: memref<8x32xf32, #tpu.memory_space<vmem>>, %arg3: memref<8x32xf32, #tpu.memory_space<vmem>>, %arg4: memref<64x32xf32, #tpu.memory_space<vmem>>, %arg5: memref<1x32xf32, #tpu.memory_space<vmem>>, %arg6: memref<64x16xf32, #tpu.memory_space<vmem>>, %arg7: memref<1x16xf32, #tpu.memory_space<vmem>>, %arg8: memref<8x48xf32, #tpu.memory_space<vmem>>) attributes {dimension_semantics = [#tpu.dimension_semantics<parallel>], iteration_bounds = array<i64: 2>, scalar_prefetch = 0 : i64, scratch_operands = 0 : i64, tpu.core_type = #tpu.core_type<tc>, window_params = [{transform_indices = @transform_0, window_bounds = array<i64: 8, 32>}, {transform_indices = @transform_1, window_bounds = array<i64: 8, 32>}, {transform_indices = @transform_2, window_bounds = array<i64: 8, 32>}, {pipeline_mode = #tpu.pipeline_mode<synchronous>, transform_indices = @transform_3, window_bounds = array<i64: 64, 32>}, {pipeline_mode = #tpu.pipeline_mode<synchronous>, transform_indices = @transform_4, window_bounds = array<i64: 1, 32>}, {pipeline_mode = #tpu.pipeline_mode<synchronous>, transform_indices = @transform_5, window_bounds = array<i64: 64, 16>}, {pipeline_mode = #tpu.pipeline_mode<synchronous>, transform_indices = @transform_6, window_bounds = array<i64: 1, 16>}, {transform_indices = @transform_7, window_bounds = array<i64: 8, 48>}]} {
    %c0 = arith.constant 0 : index
    %c0_0 = arith.constant 0 : index
    %0 = vector.load %arg1[%c0, %c0_0] : memref<8x32xf32, #tpu.memory_space<vmem>>, vector<8x32xf32>
    %c0_1 = arith.constant 0 : index
    %c0_2 = arith.constant 0 : index
    %1 = vector.load %arg2[%c0_1, %c0_2] : memref<8x32xf32, #tpu.memory_space<vmem>>, vector<8x32xf32>
    %2 = tpu.concatenate %0, %1 in 1 : vector<8x32xf32>, vector<8x32xf32> -> vector<8x64xf32>
    %c0_3 = arith.constant 0 : index
    %c0_4 = arith.constant 0 : index
    %3 = vector.load %arg4[%c0_3, %c0_4] : memref<64x32xf32, #tpu.memory_space<vmem>>, vector<64x32xf32>
    %cst = arith.constant dense<0.000000e+00> : vector<8x32xf32>
    %4 = tpu.matmul %2, %3, %cst {dimension_numbers = #tpu.dot_dimension_numbers<[1], [0], [0], [1], [0, 0, 1, 1], [], []>} : vector<8x64xf32>, vector<64x32xf32>, vector<8x32xf32> -> vector<8x32xf32>
    %c0_5 = arith.constant 0 : index
    %c0_6 = arith.constant 0 : index
    %5 = vector.load %arg5[%c0_5, %c0_6] : memref<1x32xf32, #tpu.memory_space<vmem>>, vector<1x32xf32>
    %6 = vector.broadcast %5 : vector<1x32xf32> to vector<8x32xf32>
    %7 = arith.addf %4, %6 : vector<8x32xf32>
    %c0_7 = arith.constant 0 : index
    %c0_8 = arith.constant 0 : index
    %8 = vector.load %arg3[%c0_7, %c0_8] : memref<8x32xf32, #tpu.memory_space<vmem>>, vector<8x32xf32>
    %9 = tpu.concatenate %8, %7 in 1 : vector<8x32xf32>, vector<8x32xf32> -> vector<8x64xf32>
    %c0_9 = arith.constant 0 : index
    %c0_10 = arith.constant 0 : index
    %10 = vector.load %arg6[%c0_9, %c0_10] : memref<64x16xf32, #tpu.memory_space<vmem>>, vector<64x16xf32>
    %cst_11 = arith.constant dense<0.000000e+00> : vector<8x16xf32>
    %11 = tpu.matmul %9, %10, %cst_11 {dimension_numbers = #tpu.dot_dimension_numbers<[1], [0], [0], [1], [0, 0, 1, 1], [], []>} : vector<8x64xf32>, vector<64x16xf32>, vector<8x16xf32> -> vector<8x16xf32>
    %c0_12 = arith.constant 0 : index
    %c0_13 = arith.constant 0 : index
    %12 = vector.load %arg7[%c0_12, %c0_13] : memref<1x16xf32, #tpu.memory_space<vmem>>, vector<1x16xf32>
    %13 = vector.broadcast %12 : vector<1x16xf32> to vector<8x16xf32>
    %14 = arith.addf %11, %13 : vector<8x16xf32>
    %cst_14 = arith.constant 0.000000e+00 : f32
    %15 = vector.broadcast %cst_14 : f32 to vector<8x16xf32>
    %16 = arith.maximumf %14, %15 : vector<8x16xf32>
    %17 = tpu.concatenate %7, %16 in 1 : vector<8x32xf32>, vector<8x16xf32> -> vector<8x48xf32>
    %c0_15 = arith.constant 0 : index
    %c0_16 = arith.constant 0 : index
    %18 = vector.load %arg8[%c0_15, %c0_16] : memref<8x48xf32, #tpu.memory_space<vmem>>, vector<8x48xf32>
    tpu.vector_store %arg8[%c0_15, %c0_16], %17 {strides = array<i32>} : memref<8x48xf32, #tpu.memory_space<vmem>>, vector<8x48xf32>,
    return
  }
  func.func @transform_0(%arg0: i32) -> (i32, i32) {
    %c0_i32 = arith.constant 0 : i32
    %c0_i32_0 = arith.constant 0 : i32
    return %arg0, %c0_i32 : i32, i32
  }
  func.func @transform_1(%arg0: i32) -> (i32, i32) {
    %c0_i32 = arith.constant 0 : i32
    %c0_i32_0 = arith.constant 0 : i32
    return %arg0, %c0_i32 : i32, i32
  }
  func.func @transform_2(%arg0: i32) -> (i32, i32) {
    %c0_i32 = arith.constant 0 : i32
    %c0_i32_0 = arith.constant 0 : i32
    return %arg0, %c0_i32 : i32, i32
  }
  func.func @transform_3(%arg0: i32) -> (i32, i32) {
    %c0_i32 = arith.constant 0 : i32
    %c0_i32_0 = arith.constant 0 : i32
    %c0_i32_1 = arith.constant 0 : i32
    return %c0_i32, %c0_i32_0 : i32, i32
  }
  func.func @transform_4(%arg0: i32) -> (i32, i32) {
    %c0_i32 = arith.constant 0 : i32
    %c0_i32_0 = arith.constant 0 : i32
    %c0_i32_1 = arith.constant 0 : i32
    return %c0_i32, %c0_i32_0 : i32, i32
  }
  func.func @transform_5(%arg0: i32) -> (i32, i32) {
    %c0_i32 = arith.constant 0 : i32
    %c0_i32_0 = arith.constant 0 : i32
    %c0_i32_1 = arith.constant 0 : i32
    return %c0_i32, %c0_i32_0 : i32, i32
  }
  func.func @transform_6(%arg0: i32) -> (i32, i32) {
    %c0_i32 = arith.constant 0 : i32
    %c0_i32_0 = arith.constant 0 : i32
    %c0_i32_1 = arith.constant 0 : i32
    return %c0_i32, %c0_i32_0 : i32, i32
  }
  func.func @transform_7(%arg0: i32) -> (i32, i32) {
    %c0_i32 = arith.constant 0 : i32
    %c0_i32_0 = arith.constant 0 : i32
    return %arg0, %c0_i32 : i32, i32
  }
}

</mosaic_0001>

<llo_original>
// kernel: tpu_custom_call.1
$region0: #{tpu_custom_call.1}
  #allocation0 [shape = 'u32[]', space=smem, size = 0x4, offset = 0x4, fixed_abs, tag = 'smem constant byte address 0x4 - core index']
  #allocation1 [shape = 'u32[144,128]{1,0:T(1,128)}', space=vmem, size = 0x12000, scoped, tag = 'internal scratch']
  %s0 = inlined_call_operand.vmem [shape: f32[16,32], index: 0, kind: input, shape index: {}]
  %s1 = inlined_call_operand.vmem [shape: f32[16,32], index: 1, kind: input, shape index: {}]
  %s2 = inlined_call_operand.vmem [shape: f32[16,32], index: 2, kind: input, shape index: {}]
  %s3 = inlined_call_operand.vmem [shape: f32[64,32], index: 3, kind: input, shape index: {}]
  %s4 = inlined_call_operand.vmem [shape: f32[1,32], index: 4, kind: input, shape index: {}]
  %s5 = inlined_call_operand.vmem [shape: f32[64,16], index: 5, kind: input, shape index: {}]
  %s6 = inlined_call_operand.vmem [shape: f32[1,16], index: 6, kind: input, shape index: {}]
  %s7 = inlined_call_operand.hbm [shape: f32[16,48], index: 7, kind: output, shape index: {}]
  %s8 = sld [smem:[#allocation0]]
  $region61: #{tpu_custom_call.1} parent=0
    _
  %s10 = ssub.s32 1, %s8
  %s11 = scalar_select 0, %s10, %s8
  $region1: #{tpu_custom_call.1} parent=0
    #allocation2 [shape = 'u8[8192]{0}', space=vmem, size = 0x2000, scoped, tag = 'output window, operand 0']
    #allocation3 [shape = 's32[2]{0}', space=sflag, size = 0x8, scoped, tag = 'scoped memory for tpu_custom_call.1']
    %12 = vsyncpa [#allocation3], 0
    %s13 = scalar_lea.sflag [#allocation3], 1
    %14 = vsyncpa %s13, 0
    loop: start=0, step=1, limit=4
    $region2: #{tpu_custom_call.1} parent=1 // loop_pre_header
      _
    $region3: #{tpu_custom_call.1} parent=1 // loop_header
      %s16 = sphi 0, %s20
      %p17 = scmp.ge.s32.totalorder %s16, 4
      %s26 = sphi 0, %s28
      %s29 = sphi 0, %s26
      %s30 = sphi 0, %s29
      %s46 = sphi 0, %s30
      %s52 = sphi 0, %s54
      %s55 = sphi 0, %s52
      %s56 = sphi 0, %s55
      %s72 = sphi 0, %s56
      %s78 = sphi 0, %s80
      %s81 = sphi 0, %s78
      %s82 = sphi 0, %s81
      %s98 = sphi 0, %s82
      %s102 = sphi 0, %s102
      %s104 = sphi 0, %s102
      %s105 = sphi 0, %s104
      %s119 = sphi 0, %s105
      %s123 = sphi 0, %s123
      %s125 = sphi 0, %s123
      %s126 = sphi 0, %s125
      %s140 = sphi 0, %s126
      %s144 = sphi 0, %s144
      %s146 = sphi 0, %s144
      %s147 = sphi 0, %s146
      %s161 = sphi 0, %s147
      %s165 = sphi 0, %s165
      %s167 = sphi 0, %s165
      %s168 = sphi 0, %s167
      %s182 = sphi 0, %s168
      %s188 = sphi 0, %s190
      %s191 = sphi 0, %s188
      %s192 = sphi 0, %s191
      %s208 = sphi 0, %s192
    $region4: #{tpu_custom_call.1} parent=1 // loop_header_branch
      %19 = sbr.rel (%p17) target = $region8
    $region5: #{tpu_custom_call.1} parent=1 // loop_body
      %s21 = ssub.s32 %s16, 1
      %s22 = ssub.s32 %s16, 2
      %s23 = sadd.s32 %s16, 1
      %s24 = ssub.s32 %s16, %s23
      %p25 = scmp.eq.s32.totalorder %s24, 0
      %s27 = sadd.s32 %s26, 1
      %s28 = scalar_select %p25, %s26, %s27
      %p31 = pneg %p25
      %p32 = scmp.eq.s32.totalorder %s16, 1
      %p33 = por %p31, %p32
      %p34 = scmp.ne.s32.totalorder %s26, %s29
      %p35 = scmp.eq.s32.totalorder %s16, 0
      %p36 = por %p34, %p35
      %p37 = scmp.ne.s32.totalorder %s26, %s29
      %p38 = scmp.eq.s32.totalorder %s21, 1
      %p39 = por %p37, %p38
      %p40 = scmp.ne.s32.totalorder %s29, %s30
      %p41 = scmp.eq.s32.totalorder %s21, 0
      %p42 = por %p40, %p41
      %p43 = scmp.ne.s32.totalorder %s29, %s30
      %p44 = scmp.eq.s32.totalorder %s22, 1
      %p45 = por %p43, %p44
      %p47 = scmp.ne.s32.totalorder %s30, %s46
      %p48 = scmp.eq.s32.totalorder %s22, 0
      %p49 = por %p47, %p48
      %s50 = ssub.s32 %s16, %s23
      %p51 = scmp.eq.s32.totalorder %s50, 0
      %s53 = sadd.s32 %s52, 1
      %s54 = scalar_select %p51, %s52, %s53
      %p57 = pneg %p51
      %p58 = scmp.eq.s32.totalorder %s16, 1
      %p59 = por %p57, %p58
      %p60 = scmp.ne.s32.totalorder %s52, %s55
      %p61 = scmp.eq.s32.totalorder %s16, 0
      %p62 = por %p60, %p61
      %p63 = scmp.ne.s32.totalorder %s52, %s55
      %p64 = scmp.eq.s32.totalorder %s21, 1
      %p65 = por %p63, %p64
      %p66 = scmp.ne.s32.totalorder %s55, %s56
      %p67 = scmp.eq.s32.totalorder %s21, 0
      %p68 = por %p66, %p67
      %p69 = scmp.ne.s32.totalorder %s55, %s56
      %p70 = scmp.eq.s32.totalorder %s22, 1
      %p71 = por %p69, %p70
      %p73 = scmp.ne.s32.totalorder %s56, %s72
      %p74 = scmp.eq.s32.totalorder %s22, 0
      %p75 = por %p73, %p74
      %s76 = ssub.s32 %s16, %s23
      %p77 = scmp.eq.s32.totalorder %s76, 0
      %s79 = sadd.s32 %s78, 1
      %s80 = scalar_select %p77, %s78, %s79
      %p83 = pneg %p77
      %p84 = scmp.eq.s32.totalorder %s16, 1
      %p85 = por %p83, %p84
      %p86 = scmp.ne.s32.totalorder %s78, %s81
      %p87 = scmp.eq.s32.totalorder %s16, 0
      %p88 = por %p86, %p87
      %p89 = scmp.ne.s32.totalorder %s78, %s81
      %p90 = scmp.eq.s32.totalorder %s21, 1
      %p91 = por %p89, %p90
      %p92 = scmp.ne.s32.totalorder %s81, %s82
      %p93 = scmp.eq.s32.totalorder %s21, 0
      %p94 = por %p92, %p93
      %p95 = scmp.ne.s32.totalorder %s81, %s82
      %p96 = scmp.eq.s32.totalorder %s22, 1
      %p97 = por %p95, %p96
      %p99 = scmp.ne.s32.totalorder %s82, %s98
      %p100 = scmp.eq.s32.totalorder %s22, 0
      %p101 = por %p99, %p100
      %s103 = sadd.s32 %s102, 1
      %p106 = scmp.eq.s32.totalorder %s16, 1
      %p107 = scmp.ne.s32.totalorder %s102, %s104
      %p108 = scmp.eq.s32.totalorder %s16, 0
      %p109 = por %p107, %p108
      %p110 = scmp.ne.s32.totalorder %s102, %s104
      %p111 = scmp.eq.s32.totalorder %s21, 1
      %p112 = por %p110, %p111
      %p113 = scmp.ne.s32.totalorder %s104, %s105
      %p114 = scmp.eq.s32.totalorder %s21, 0
      %p115 = por %p113, %p114
      %p116 = scmp.ne.s32.totalorder %s104, %s105
      %p117 = scmp.eq.s32.totalorder %s22, 1
      %p118 = por %p116, %p117
      %p120 = scmp.ne.s32.totalorder %s105, %s119
      %p121 = scmp.eq.s32.totalorder %s22, 0
      %p122 = por %p120, %p121
      %s124 = sadd.s32 %s123, 1
      %p127 = scmp.eq.s32.totalorder %s16, 1
      %p128 = scmp.ne.s32.totalorder %s123, %s125
      %p129 = scmp.eq.s32.totalorder %s16, 0
      %p130 = por %p128, %p129
      %p131 = scmp.ne.s32.totalorder %s123, %s125
      %p132 = scmp.eq.s32.totalorder %s21, 1
      %p133 = por %p131, %p132
      %p134 = scmp.ne.s32.totalorder %s125, %s126
      %p135 = scmp.eq.s32.totalorder %s21, 0
      %p136 = por %p134, %p135
      %p137 = scmp.ne.s32.totalorder %s125, %s126
      %p138 = scmp.eq.s32.totalorder %s22, 1
      %p139 = por %p137, %p138
      %p141 = scmp.ne.s32.totalorder %s126, %s140
      %p142 = scmp.eq.s32.totalorder %s22, 0
      %p143 = por %p141, %p142
      %s145 = sadd.s32 %s144, 1
      %p148 = scmp.eq.s32.totalorder %s16, 1
      %p149 = scmp.ne.s32.totalorder %s144, %s146
      %p150 = scmp.eq.s32.totalorder %s16, 0
      %p151 = por %p149, %p150
      %p152 = scmp.ne.s32.totalorder %s144, %s146
      %p153 = scmp.eq.s32.totalorder %s21, 1
      %p154 = por %p152, %p153
      %p155 = scmp.ne.s32.totalorder %s146, %s147
      %p156 = scmp.eq.s32.totalorder %s21, 0
      %p157 = por %p155, %p156
      %p158 = scmp.ne.s32.totalorder %s146, %s147
      %p159 = scmp.eq.s32.totalorder %s22, 1
      %p160 = por %p158, %p159
      %p162 = scmp.ne.s32.totalorder %s147, %s161
      %p163 = scmp.eq.s32.totalorder %s22, 0
      %p164 = por %p162, %p163
      %s166 = sadd.s32 %s165, 1
      %p169 = scmp.eq.s32.totalorder %s16, 1
      %p170 = scmp.ne.s32.totalorder %s165, %s167
      %p171 = scmp.eq.s32.totalorder %s16, 0
      %p172 = por %p170, %p171
      %p173 = scmp.ne.s32.totalorder %s165, %s167
      %p174 = scmp.eq.s32.totalorder %s21, 1
      %p175 = por %p173, %p174
      %p176 = scmp.ne.s32.totalorder %s167, %s168
      %p177 = scmp.eq.s32.totalorder %s21, 0
      %p178 = por %p176, %p177
      %p179 = scmp.ne.s32.totalorder %s167, %s168
      %p180 = scmp.eq.s32.totalorder %s22, 1
      %p181 = por %p179, %p180
      %p183 = scmp.ne.s32.totalorder %s168, %s182
      %p184 = scmp.eq.s32.totalorder %s22, 0
      %p185 = por %p183, %p184
      %s186 = ssub.s32 %s16, %s23
      %p187 = scmp.eq.s32.totalorder %s186, 0
      %s189 = sadd.s32 %s188, 1
      %s190 = scalar_select %p187, %s188, %s189
      %p193 = pneg %p187
      %p194 = scmp.eq.s32.totalorder %s16, 1
      %p195 = por %p193, %p194
      %p196 = scmp.ne.s32.totalorder %s188, %s191
      %p197 = scmp.eq.s32.totalorder %s16, 0
      %p198 = por %p196, %p197
      %p199 = scmp.ne.s32.totalorder %s188, %s191
      %p200 = scmp.eq.s32.totalorder %s21, 1
      %p201 = por %p199, %p200
      %p202 = scmp.ne.s32.totalorder %s191, %s192
      %p203 = scmp.eq.s32.totalorder %s21, 0
      %p204 = por %p202, %p203
      %p205 = scmp.ne.s32.totalorder %s191, %s192
      %p206 = scmp.eq.s32.totalorder %s22, 1
      %p207 = por %p205, %p206
      %p209 = scmp.ne.s32.totalorder %s192, %s208
      %p210 = scmp.eq.s32.totalorder %s22, 0
      %p211 = por %p209, %p210
      %p212 = scmp.le.s32.totalorder 1, %s16
      %p213 = scmp.lt.s32.totalorder %s16, 3
      %p214 = pnand %p212, %p213
      %p215 = pneg %p214
      // Predicated region
      $region9: #{tpu_custom_call.1} parent=5 // pred_check
        _
      $region10: #{tpu_custom_call.1} parent=5 // pred_check_branch
        %217 = sbr.rel (%p214) target = $region12
      $region11: #{tpu_custom_call.1} parent=5 // pred_region
        %s218 = ssub.s32 %s16, 1
        // Predicated region
        $region13: #{tpu_custom_call.1} parent=11 // pred_check
          %p219 = pneg %p115
        $region14: #{tpu_custom_call.1} parent=11 // pred_check_branch
          %221 = sbr.rel (%p219) target = $region16
        $region15: #{tpu_custom_call.1} parent=11 // pred_region
          _
        $region16: #{tpu_custom_call.1} parent=11 // pred_fallthru
          _
        // Predicated region
        $region17: #{tpu_custom_call.1} parent=11 // pred_check
          %p222 = pneg %p136
        $region18: #{tpu_custom_call.1} parent=11 // pred_check_branch
          %224 = sbr.rel (%p222) target = $region20
        $region19: #{tpu_custom_call.1} parent=11 // pred_region
          _
        $region20: #{tpu_custom_call.1} parent=11 // pred_fallthru
          _
        // Predicated region
        $region21: #{tpu_custom_call.1} parent=11 // pred_check
          %p225 = pneg %p157
        $region22: #{tpu_custom_call.1} parent=11 // pred_check_branch
          %227 = sbr.rel (%p225) target = $region24
        $region23: #{tpu_custom_call.1} parent=11 // pred_region
          _
        $region24: #{tpu_custom_call.1} parent=11 // pred_fallthru
          _
        // Predicated region
        $region25: #{tpu_custom_call.1} parent=11 // pred_check
          %p228 = pneg %p178
        $region26: #{tpu_custom_call.1} parent=11 // pred_check_branch
          %230 = sbr.rel (%p228) target = $region28
        $region27: #{tpu_custom_call.1} parent=11 // pred_region
          _
        $region28: #{tpu_custom_call.1} parent=11 // pred_fallthru
          _
      $region12: #{tpu_custom_call.1} parent=5 // pred_fallthru
        _
      %p231 = scmp.lt.s32.totalorder %s16, 2
      // Predicated region
      $region29: #{tpu_custom_call.1} parent=5 // pred_check
        %p232 = pneg %p231
      $region30: #{tpu_custom_call.1} parent=5 // pred_check_branch
        %234 = sbr.rel (%p232) target = $region32
      $region31: #{tpu_custom_call.1} parent=5 // pred_region
        // Predicated region
        $region33: #{tpu_custom_call.1} parent=31 // pred_check
          %p235 = pneg %p36
        $region34: #{tpu_custom_call.1} parent=31 // pred_check_branch
          %237 = sbr.rel (%p235) target = $region36
        $region35: #{tpu_custom_call.1} parent=31 // pred_region
          %p238 = scmp.lt.s32.totalorder %s16, 1
          %s239 = scalar_select %p238, %s16, 1
          %s240 = smul.addr %s239, 8
          %s241 = scalar_lea.vmem %s0, %s240
        $region36: #{tpu_custom_call.1} parent=31 // pred_fallthru
          _
        // Predicated region
        $region37: #{tpu_custom_call.1} parent=31 // pred_check
          %p242 = pneg %p62
        $region38: #{tpu_custom_call.1} parent=31 // pred_check_branch
          %244 = sbr.rel (%p242) target = $region40
        $region39: #{tpu_custom_call.1} parent=31 // pred_region
          %p245 = scmp.lt.s32.totalorder %s16, 1
          %s246 = scalar_select %p245, %s16, 1
          %s247 = smul.addr %s246, 8
          %s248 = scalar_lea.vmem %s1, %s247
        $region40: #{tpu_custom_call.1} parent=31 // pred_fallthru
          _
        // Predicated region
        $region41: #{tpu_custom_call.1} parent=31 // pred_check
          %p249 = pneg %p88
        $region42: #{tpu_custom_call.1} parent=31 // pred_check_branch
          %251 = sbr.rel (%p249) target = $region44
        $region43: #{tpu_custom_call.1} parent=31 // pred_region
          %p252 = scmp.lt.s32.totalorder %s16, 1
          %s253 = scalar_select %p252, %s16, 1
          %s254 = smul.addr %s253, 8
          %s255 = scalar_lea.vmem %s2, %s254
        $region44: #{tpu_custom_call.1} parent=31 // pred_fallthru
          _
      $region32: #{tpu_custom_call.1} parent=5 // pred_fallthru
        _
      %p256 = scmp.le.s32.totalorder 1, %s16
      %p257 = scmp.lt.s32.totalorder %s16, 3
      %p258 = pnand %p256, %p257
      %p259 = pneg %p258
      // Predicated region
      $region45: #{tpu_custom_call.1} parent=5 // pred_check
        _
      $region46: #{tpu_custom_call.1} parent=5 // pred_check_branch
        %261 = sbr.rel (%p258) target = $region48
      $region47: #{tpu_custom_call.1} parent=5 // pred_region
        %s262 = ssub.s32 %s16, 1
        %p263 = scmp.lt.s32.totalorder %s21, 1
        %s264 = scalar_select %p263, %s21, 1
        %s265 = smul.addr %s264, 8
        %s266 = scalar_lea.vmem %s0, %s265
        %p267 = pneg %p42
        %p268 = pneg %p39
        %p269 = scmp.lt.s32.totalorder %s21, 1
        %s270 = scalar_select %p269, %s21, 1
        %s271 = smul.addr %s270, 8
        %s272 = scalar_lea.vmem %s1, %s271
        %p273 = pneg %p68
        %p274 = pneg %p65
        %p275 = scmp.lt.s32.totalorder %s21, 1
        %s276 = scalar_select %p275, %s21, 1
        %s277 = smul.addr %s276, 8
        %s278 = scalar_lea.vmem %s2, %s277
        %p279 = pneg %p94
        %p280 = pneg %p91
        %p281 = pneg %p115
        %p282 = pneg %p112
        %p283 = pneg %p136
        %p284 = pneg %p133
        %p285 = pneg %p157
        %p286 = pneg %p154
        %p287 = pneg %p178
        %p288 = pneg %p175
        %p289 = pneg %p204
        %p290 = pneg %p201
        %s291 = sand.u32 %s191, 1
        %s292 = scalar_lea.sflag [#allocation3], %s291
        %s293 = sand.u32 %s191, 1
        %s294 = smul.addr %s293, 8
        %s295 = scalar_lea.vmem [#allocation2], %s294
        %p296 = scmp.lt.s32.totalorder %s21, 1
        %s297 = scalar_select %p296, %s21, 1
        %s298 = smul.addr %s297, 8
        %s299 = scalar_lea.vmem %s0, %s298
        %p300 = scmp.lt.s32.totalorder %s21, 1
        %s301 = scalar_select %p300, %s21, 1
        %s302 = smul.addr %s301, 8
        %s303 = scalar_lea.vmem %s1, %s302
        %p304 = scmp.lt.s32.totalorder %s21, 1
        %s305 = scalar_select %p304, %s21, 1
        %s306 = smul.addr %s305, 8
        %s307 = scalar_lea.vmem %s2, %s306
        %v308 = vld [vmem:[%s299] sm:$0xff]
        %v309 = vld [vmem:[%s303] sm:$0xff]
        %311 = vrot.lane.b32.xlu0 %v309, 32
        %v312 = vpop.permute.xlu0 %311
        %vm314 = vcmask 261120
        %v315 = vsel %vm314, %v308, %v312
        %v316 = vld [vmem:[%s3] sm:$0xff]
        %v317 = vld [vmem:[%s3 + $0x8] sm:$0xff]
        %v318 = vld [vmem:[%s3 + $0x10] sm:$0xff]
        %v319 = vld [vmem:[%s3 + $0x18] sm:$0xff]
        %v320 = vld [vmem:[%s3 + $0x20] sm:$0xff]
        %v321 = vld [vmem:[%s3 + $0x28] sm:$0xff]
        %v322 = vld [vmem:[%s3 + $0x30] sm:$0xff]
        %v323 = vld [vmem:[%s3 + $0x38] sm:$0xff]
        %v324 = vld [vmem:[%s4] sm:$0x1]
        %v326 = vlaneseq
        %v327 = vshrl.u32 %v326, 7
        %v328 = vsub.s32 0, %v327
        %v329 = vrot.slane %v324, %v328
        %vm331 = vcmask 523264
        %v333 = vsel %vm331, %v315, 0
        %335 = vmatprep.subr.mxu0 0.0
        %336 = vmatpush1.msra.mxu0 0.0
        %337 = vmatprep.subr.mxu0 0.0
        %338 = vmatpush1.msra.mxu0 0.0
        %339 = vmatprep.subr.mxu0 0.0
        %340 = vmatpush1.msra.mxu0 0.0
        %341 = vmatprep.subr.mxu0 0.0
        %342 = vmatpush1.msra.mxu0 0.0
        %343 = vmatprep.subr.mxu0 0.0
        %344 = vmatpush1.msra.mxu0 0.0
        %345 = vmatprep.subr.mxu0 0.0
        %346 = vmatpush1.msra.mxu0 0.0
        %347 = vmatprep.subr.mxu0 0.0
        %348 = vmatpush1.msra.mxu0 0.0
        %349 = vmatprep.subr.mxu0 0.0
        %350 = vmatpush1.msra.mxu0 0.0
        %351 = vmatprep.subr.mxu0 0.0
        %352 = vmatpush1.msra.mxu0 %v323
        %353 = vmatprep.subr.mxu0 0.0
        %354 = vmatpush1.msra.mxu0 %v322
        %355 = vmatprep.subr.mxu0 0.0
        %356 = vmatpush1.msra.mxu0 %v321
        %357 = vmatprep.subr.mxu0 0.0
        %358 = vmatpush1.msra.mxu0 %v320
        %359 = vmatprep.subr.mxu0 0.0
        %360 = vmatpush1.msra.mxu0 %v319
        %361 = vmatprep.subr.mxu0 0.0
        %362 = vmatpush1.msra.mxu0 %v318
        %363 = vmatprep.subr.mxu0 0.0
        %364 = vmatpush1.msra.mxu0 %v317
        %365 = vmatprep.subr.mxu0 0.0
        %366 = vmatpush1.msra.mxu0 %v316
        %367 = vmatprep.subr.mxu0 0.0
        %368 = vmatpush2.msra.mxu0 0.0
        %369 = vmatprep.subr.mxu0 0.0
        %370 = vmatpush2.msra.mxu0 0.0
        %371 = vmatprep.subr.mxu0 0.0
        %372 = vmatpush2.msra.mxu0 0.0
        %373 = vmatprep.subr.mxu0 0.0
        %374 = vmatpush2.msra.mxu0 0.0
        %375 = vmatprep.subr.mxu0 0.0
        %376 = vmatpush2.msra.mxu0 0.0
        %377 = vmatprep.subr.mxu0 0.0
        %378 = vmatpush2.msra.mxu0 0.0
        %379 = vmatprep.subr.mxu0 0.0
        %380 = vmatpush2.msra.mxu0 0.0
        %381 = vmatprep.subr.mxu0 0.0
        %382 = vmatpush2.msra.mxu0 0.0
        %383 = vmatprep.subr.mxu0 0.0
        %384 = vmatpush2.msra.mxu0 0.0
        %385 = vmatprep.subr.mxu0 0.0
        %386 = vmatpush2.msra.mxu0 0.0
        %387 = vmatprep.subr.mxu0 0.0
        %388 = vmatpush2.msra.mxu0 0.0
        %389 = vmatprep.subr.mxu0 0.0
        %390 = vmatpush2.msra.mxu0 0.0
        %391 = vmatprep.subr.mxu0 0.0
        %392 = vmatpush2.msra.mxu0 0.0
        %393 = vmatprep.subr.mxu0 0.0
        %394 = vmatpush2.msra.mxu0 0.0
        %395 = vmatprep.subr.mxu0 0.0
        %396 = vmatpush2.msra.mxu0 0.0
        %397 = vmatprep.subr.mxu0 0.0
        %398 = vmatpush2.msra.mxu0 0.0
        %399 = vmatprep.mubr.f32.mxu0 0.0
        %400 = vmatmul.mubr.f32.gmra.mxu0 %v333
        %v401 = vpop.f32.mrf.mxu0
        %v402 = vadd.f32 %v329, %v401
        %v403 = vpop.f32.mrf.mxu0
        %404 = vdwg.mxu0
        %v405 = vld [vmem:[%s307] sm:$0xff]
        %407 = vrot.lane.b32.xlu0 %v402, 32
        %v408 = vpop.permute.xlu0 %407
        %v410 = vsel %vm314, %v405, %v408
        %v411 = vld [vmem:[%s5] sm:$0xff]
        %v412 = vld [vmem:[%s5 + $0x8] sm:$0xff]
        %v413 = vld [vmem:[%s5 + $0x10] sm:$0xff]
        %v414 = vld [vmem:[%s5 + $0x18] sm:$0xff]
        %v415 = vld [vmem:[%s5 + $0x20] sm:$0xff]
        %v416 = vld [vmem:[%s5 + $0x28] sm:$0xff]
        %v417 = vld [vmem:[%s5 + $0x30] sm:$0xff]
        %v418 = vld [vmem:[%s5 + $0x38] sm:$0xff]
        %v419 = vld [vmem:[%s6] sm:$0x1]
        %v421 = vlaneseq
        %v422 = vshrl.u32 %v421, 7
        %v423 = vsub.s32 0, %v422
        %v424 = vrot.slane %v419, %v423
        %v427 = vsel %vm331, %v410, 0
        %429 = vmatprep.subr.mxu0 0.0
        %430 = vmatpush1.msra.mxu0 0.0
        %431 = vmatprep.subr.mxu0 0.0
        %432 = vmatpush1.msra.mxu0 0.0
        %433 = vmatprep.subr.mxu0 0.0
        %434 = vmatpush1.msra.mxu0 0.0
        %435 = vmatprep.subr.mxu0 0.0
        %436 = vmatpush1.msra.mxu0 0.0
        %437 = vmatprep.subr.mxu0 0.0
        %438 = vmatpush1.msra.mxu0 0.0
        %439 = vmatprep.subr.mxu0 0.0
        %440 = vmatpush1.msra.mxu0 0.0
        %441 = vmatprep.subr.mxu0 0.0
        %442 = vmatpush1.msra.mxu0 0.0
        %443 = vmatprep.subr.mxu0 0.0
        %444 = vmatpush1.msra.mxu0 0.0
        %445 = vmatprep.subr.mxu0 0.0
        %446 = vmatpush1.msra.mxu0 %v418
        %447 = vmatprep.subr.mxu0 0.0
        %448 = vmatpush1.msra.mxu0 %v417
        %449 = vmatprep.subr.mxu0 0.0
        %450 = vmatpush1.msra.mxu0 %v416
        %451 = vmatprep.subr.mxu0 0.0
        %452 = vmatpush1.msra.mxu0 %v415
        %453 = vmatprep.subr.mxu0 0.0
        %454 = vmatpush1.msra.mxu0 %v414
        %455 = vmatprep.subr.mxu0 0.0
        %456 = vmatpush1.msra.mxu0 %v413
        %457 = vmatprep.subr.mxu0 0.0
        %458 = vmatpush1.msra.mxu0 %v412
        %459 = vmatprep.subr.mxu0 0.0
        %460 = vmatpush1.msra.mxu0 %v411
        %461 = vmatprep.subr.mxu0 0.0
        %462 = vmatpush2.msra.mxu0 0.0
        %463 = vmatprep.subr.mxu0 0.0
        %464 = vmatpush2.msra.mxu0 0.0
        %465 = vmatprep.subr.mxu0 0.0
        %466 = vmatpush2.msra.mxu0 0.0
        %467 = vmatprep.subr.mxu0 0.0
        %468 = vmatpush2.msra.mxu0 0.0
        %469 = vmatprep.subr.mxu0 0.0
        %470 = vmatpush2.msra.mxu0 0.0
        %471 = vmatprep.subr.mxu0 0.0
        %472 = vmatpush2.msra.mxu0 0.0
        %473 = vmatprep.subr.mxu0 0.0
        %474 = vmatpush2.msra.mxu0 0.0
        %475 = vmatprep.subr.mxu0 0.0
        %476 = vmatpush2.msra.mxu0 0.0
        %477 = vmatprep.subr.mxu0 0.0
        %478 = vmatpush2.msra.mxu0 0.0
        %479 = vmatprep.subr.mxu0 0.0
        %480 = vmatpush2.msra.mxu0 0.0
        %481 = vmatprep.subr.mxu0 0.0
        %482 = vmatpush2.msra.mxu0 0.0
        %483 = vmatprep.subr.mxu0 0.0
        %484 = vmatpush2.msra.mxu0 0.0
        %485 = vmatprep.subr.mxu0 0.0
        %486 = vmatpush2.msra.mxu0 0.0
        %487 = vmatprep.subr.mxu0 0.0
        %488 = vmatpush2.msra.mxu0 0.0
        %489 = vmatprep.subr.mxu0 0.0
        %490 = vmatpush2.msra.mxu0 0.0
        %491 = vmatprep.subr.mxu0 0.0
        %492 = vmatpush2.msra.mxu0 0.0
        %493 = vmatprep.mubr.f32.mxu0 0.0
        %494 = vmatmul.mubr.f32.gmra.mxu0 %v427
        %v495 = vpop.f32.mrf.mxu0
        %v496 = vadd.f32 %v424, %v495
        %v497 = vpop.f32.mrf.mxu0
        %498 = vdwg.mxu0
        %v499 = vmax.f32 %v496, 0.0
        %501 = vrot.lane.b32.xlu0 %v499, 32
        %v502 = vpop.permute.xlu0 %501
        %v504 = vsel %vm314, %v402, %v502
        %vm505 = vcmask 392192
        %506 = vst.msk [vmem:[%s295] sm:$0xff] %vm505, %v504
        %s507 = sand.u32 %s191, 1
        %s508 = scalar_lea.sflag [#allocation3], %s507
        %s509 = sand.u32 %s191, 1
        %s510 = smul.addr %s509, 8
        %s511 = scalar_lea.vmem [#allocation2], %s510
        // Predicated region
        $region49: #{tpu_custom_call.1} parent=47 // pred_check
          %p512 = pneg %p201
        $region50: #{tpu_custom_call.1} parent=47 // pred_check_branch
          %514 = sbr.rel (%p512) target = $region52
        $region51: #{tpu_custom_call.1} parent=47 // pred_region
          %s516 = ssub.s32 128, 128
          %517 = vsyncadd %s508, %s516
          %s518 = smul.addr %s21, 128
          %s519 = scalar_lea.hbm %s7, %s518
          %s521 = sshll.u32 %s511, 4
          %s522 = int_to_ptr.vmem [resolvable:$true] %s521
          %524 = dma.vmem_to_hbm [thread:$0]  %s522, 128, %s519, %s508
        $region52: #{tpu_custom_call.1} parent=47 // pred_fallthru
          _
      $region48: #{tpu_custom_call.1} parent=5 // pred_fallthru
        _
      %p525 = scmp.le.s32.totalorder 2, %s16
      // Predicated region
      $region53: #{tpu_custom_call.1} parent=5 // pred_check
        %p526 = pneg %p525
      $region54: #{tpu_custom_call.1} parent=5 // pred_check_branch
        %528 = sbr.rel (%p526) target = $region56
      $region55: #{tpu_custom_call.1} parent=5 // pred_region
        %s529 = ssub.s32 %s16, 2
        // Predicated region
        $region57: #{tpu_custom_call.1} parent=55 // pred_check
          %p530 = pneg %p207
        $region58: #{tpu_custom_call.1} parent=55 // pred_check_branch
          %532 = sbr.rel (%p530) target = $region60
        $region59: #{tpu_custom_call.1} parent=55 // pred_region
          %s533 = sand.u32 %s192, 1
          %s534 = scalar_lea.sflag [#allocation3], %s533
          %s535 = sand.u32 %s192, 1
          %s536 = smul.addr %s535, 8
          %s537 = scalar_lea.vmem [#allocation2], %s536
          %538 = dma.done %s534, 128
        $region60: #{tpu_custom_call.1} parent=55 // pred_fallthru
          _
      $region56: #{tpu_custom_call.1} parent=5 // pred_fallthru
        _
    $region6: #{tpu_custom_call.1} parent=1 // loop_footer
      %s20 = sadd.s32 1, %s16
    $region7: #{tpu_custom_call.1} parent=1 // loop_footer_branch
      %15 = sbr.rel target = $region3
    $region8: #{tpu_custom_call.1} parent=1 // loop_exit
      _
    %539 = vsyncpa [#allocation3], 1
    %s540 = scalar_lea.sflag [#allocation3], 1
    %541 = vsyncpa %s540, 1

// kernel: tpu_custom_call.1
$region0: #{tpu_custom_call.1}
  #allocation0 [shape = 'u32[]', space=smem, size = 0x4, offset = 0x4, fixed_abs, tag = 'smem constant byte address 0x4 - core index']
  #allocation1 [shape = 'u32[144,128]{1,0:T(1,128)}', space=vmem, size = 0x12000, scoped, tag = 'internal scratch']
  %s0 = inlined_call_operand.vmem [shape: f32[16,32], index: 0, kind: input, shape index: {}]
  %s1 = inlined_call_operand.vmem [shape: f32[16,32], index: 1, kind: input, shape index: {}]
  %s2 = inlined_call_operand.vmem [shape: f32[16,32], index: 2, kind: input, shape index: {}]
  %s3 = inlined_call_operand.vmem [shape: f32[64,32], index: 3, kind: input, shape index: {}]
  %s4 = inlined_call_operand.vmem [shape: f32[1,32], index: 4, kind: input, shape index: {}]
  %s5 = inlined_call_operand.vmem [shape: f32[64,16], index: 5, kind: input, shape index: {}]
  %s6 = inlined_call_operand.vmem [shape: f32[1,16], index: 6, kind: input, shape index: {}]
  %s7 = inlined_call_operand.hbm [shape: f32[16,48], index: 7, kind: output, shape index: {}]
  %s8 = sld [smem:[#allocation0]]
  $region61: #{tpu_custom_call.1} parent=0
    _
  %s10 = ssub.s32 1, %s8
  %s11 = scalar_select 0, %s10, %s8
  $region1: #{tpu_custom_call.1} parent=0
    #allocation2 [shape = 'u8[8192]{0}', space=vmem, size = 0x2000, scoped, tag = 'output window, operand 0']
    #allocation3 [shape = 's32[2]{0}', space=sflag, size = 0x8, scoped, tag = 'scoped memory for tpu_custom_call.1']
    %12 = vsyncpa [#allocation3], 0
    %s13 = scalar_lea.sflag [#allocation3], 1
    %14 = vsyncpa %s13, 0
    loop: start=0, step=1, limit=4
    $region2: #{tpu_custom_call.1} parent=1 // loop_pre_header
      _
    $region3: #{tpu_custom_call.1} parent=1 // loop_header
      %s16 = sphi 0, %s20
      %p17 = scmp.ge.s32.totalorder %s16, 4
      %s26 = sphi 0, %s28
      %s29 = sphi 0, %s26
      %s30 = sphi 0, %s29
      %s46 = sphi 0, %s30
      %s52 = sphi 0, %s54
      %s55 = sphi 0, %s52
      %s56 = sphi 0, %s55
      %s72 = sphi 0, %s56
      %s78 = sphi 0, %s80
      %s81 = sphi 0, %s78
      %s82 = sphi 0, %s81
      %s98 = sphi 0, %s82
      %s102 = sphi 0, %s102
      %s104 = sphi 0, %s102
      %s105 = sphi 0, %s104
      %s119 = sphi 0, %s105
      %s123 = sphi 0, %s123
      %s125 = sphi 0, %s123
      %s126 = sphi 0, %s125
      %s140 = sphi 0, %s126
      %s144 = sphi 0, %s144
      %s146 = sphi 0, %s144
      %s147 = sphi 0, %s146
      %s161 = sphi 0, %s147
      %s165 = sphi 0, %s165
      %s167 = sphi 0, %s165
      %s168 = sphi 0, %s167
      %s182 = sphi 0, %s168
      %s188 = sphi 0, %s190
      %s191 = sphi 0, %s188
      %s192 = sphi 0, %s191
      %s208 = sphi 0, %s192
    $region4: #{tpu_custom_call.1} parent=1 // loop_header_branch
      %19 = sbr.rel (%p17) target = $region8
    $region5: #{tpu_custom_call.1} parent=1 // loop_body
      %s21 = ssub.s32 %s16, 1
      %s22 = ssub.s32 %s16, 2
      %s23 = sadd.s32 %s16, 1
      %s24 = ssub.s32 %s16, %s23
      %p25 = scmp.eq.s32.totalorder %s24, 0
      %s27 = sadd.s32 %s26, 1
      %s28 = scalar_select %p25, %s26, %s27
      %p31 = pneg %p25
      %p32 = scmp.eq.s32.totalorder %s16, 1
      %p33 = por %p31, %p32
      %p34 = scmp.ne.s32.totalorder %s26, %s29
      %p35 = scmp.eq.s32.totalorder %s16, 0
      %p36 = por %p34, %p35
      %p37 = scmp.ne.s32.totalorder %s26, %s29
      %p38 = scmp.eq.s32.totalorder %s21, 1
      %p39 = por %p37, %p38
      %p40 = scmp.ne.s32.totalorder %s29, %s30
      %p41 = scmp.eq.s32.totalorder %s21, 0
      %p42 = por %p40, %p41
      %p43 = scmp.ne.s32.totalorder %s29, %s30
      %p44 = scmp.eq.s32.totalorder %s22, 1
      %p45 = por %p43, %p44
      %p47 = scmp.ne.s32.totalorder %s30, %s46
      %p48 = scmp.eq.s32.totalorder %s22, 0
      %p49 = por %p47, %p48
      %s50 = ssub.s32 %s16, %s23
      %p51 = scmp.eq.s32.totalorder %s50, 0
      %s53 = sadd.s32 %s52, 1
      %s54 = scalar_select %p51, %s52, %s53
      %p57 = pneg %p51
      %p58 = scmp.eq.s32.totalorder %s16, 1
      %p59 = por %p57, %p58
      %p60 = scmp.ne.s32.totalorder %s52, %s55
      %p61 = scmp.eq.s32.totalorder %s16, 0
      %p62 = por %p60, %p61
      %p63 = scmp.ne.s32.totalorder %s52, %s55
      %p64 = scmp.eq.s32.totalorder %s21, 1
      %p65 = por %p63, %p64
      %p66 = scmp.ne.s32.totalorder %s55, %s56
      %p67 = scmp.eq.s32.totalorder %s21, 0
      %p68 = por %p66, %p67
      %p69 = scmp.ne.s32.totalorder %s55, %s56
      %p70 = scmp.eq.s32.totalorder %s22, 1
      %p71 = por %p69, %p70
      %p73 = scmp.ne.s32.totalorder %s56, %s72
      %p74 = scmp.eq.s32.totalorder %s22, 0
      %p75 = por %p73, %p74
      %s76 = ssub.s32 %s16, %s23
      %p77 = scmp.eq.s32.totalorder %s76, 0
      %s79 = sadd.s32 %s78, 1
      %s80 = scalar_select %p77, %s78, %s79
      %p83 = pneg %p77
      %p84 = scmp.eq.s32.totalorder %s16, 1
      %p85 = por %p83, %p84
      %p86 = scmp.ne.s32.totalorder %s78, %s81
      %p87 = scmp.eq.s32.totalorder %s16, 0
      %p88 = por %p86, %p87
      %p89 = scmp.ne.s32.totalorder %s78, %s81
      %p90 = scmp.eq.s32.totalorder %s21, 1
      %p91 = por %p89, %p90
      %p92 = scmp.ne.s32.totalorder %s81, %s82
      %p93 = scmp.eq.s32.totalorder %s21, 0
      %p94 = por %p92, %p93
      %p95 = scmp.ne.s32.totalorder %s81, %s82
      %p96 = scmp.eq.s32.totalorder %s22, 1
      %p97 = por %p95, %p96
      %p99 = scmp.ne.s32.totalorder %s82, %s98
      %p100 = scmp.eq.s32.totalorder %s22, 0
      %p101 = por %p99, %p100
      %s103 = sadd.s32 %s102, 1
      %p106 = scmp.eq.s32.totalorder %s16, 1
      %p107 = scmp.ne.s32.totalorder %s102, %s104
      %p108 = scmp.eq.s32.totalorder %s16, 0
      %p109 = por %p107, %p108
      %p110 = scmp.ne.s32.totalorder %s102, %s104
      %p111 = scmp.eq.s32.totalorder %s21, 1
      %p112 = por %p110, %p111
      %p113 = scmp.ne.s32.totalorder %s104, %s105
      %p114 = scmp.eq.s32.totalorder %s21, 0
      %p115 = por %p113, %p114
      %p116 = scmp.ne.s32.totalorder %s104, %s105
      %p117 = scmp.eq.s32.totalorder %s22, 1
      %p118 = por %p116, %p117
      %p120 = scmp.ne.s32.totalorder %s105, %s119
      %p121 = scmp.eq.s32.totalorder %s22, 0
      %p122 = por %p120, %p121
      %s124 = sadd.s32 %s123, 1
      %p127 = scmp.eq.s32.totalorder %s16, 1
      %p128 = scmp.ne.s32.totalorder %s123, %s125
      %p129 = scmp.eq.s32.totalorder %s16, 0
      %p130 = por %p128, %p129
      %p131 = scmp.ne.s32.totalorder %s123, %s125
      %p132 = scmp.eq.s32.totalorder %s21, 1
      %p133 = por %p131, %p132
      %p134 = scmp.ne.s32.totalorder %s125, %s126
      %p135 = scmp.eq.s32.totalorder %s21, 0
      %p136 = por %p134, %p135
      %p137 = scmp.ne.s32.totalorder %s125, %s126
      %p138 = scmp.eq.s32.totalorder %s22, 1
      %p139 = por %p137, %p138
      %p141 = scmp.ne.s32.totalorder %s126, %s140
      %p142 = scmp.eq.s32.totalorder %s22, 0
      %p143 = por %p141, %p142
      %s145 = sadd.s32 %s144, 1
      %p148 = scmp.eq.s32.totalorder %s16, 1
      %p149 = scmp.ne.s32.totalorder %s144, %s146
      %p150 = scmp.eq.s32.totalorder %s16, 0
      %p151 = por %p149, %p150
      %p152 = scmp.ne.s32.totalorder %s144, %s146
      %p153 = scmp.eq.s32.totalorder %s21, 1
      %p154 = por %p152, %p153
      %p155 = scmp.ne.s32.totalorder %s146, %s147
      %p156 = scmp.eq.s32.totalorder %s21, 0
      %p157 = por %p155, %p156
      %p158 = scmp.ne.s32.totalorder %s146, %s147
      %p159 = scmp.eq.s32.totalorder %s22, 1
      %p160 = por %p158, %p159
      %p162 = scmp.ne.s32.totalorder %s147, %s161
      %p163 = scmp.eq.s32.totalorder %s22, 0
      %p164 = por %p162, %p163
      %s166 = sadd.s32 %s165, 1
      %p169 = scmp.eq.s32.totalorder %s16, 1
      %p170 = scmp.ne.s32.totalorder %s165, %s167
      %p171 = scmp.eq.s32.totalorder %s16, 0
      %p172 = por %p170, %p171
      %p173 = scmp.ne.s32.totalorder %s165, %s167
      %p174 = scmp.eq.s32.totalorder %s21, 1
      %p175 = por %p173, %p174
      %p176 = scmp.ne.s32.totalorder %s167, %s168
      %p177 = scmp.eq.s32.totalorder %s21, 0
      %p178 = por %p176, %p177
      %p179 = scmp.ne.s32.totalorder %s167, %s168
      %p180 = scmp.eq.s32.totalorder %s22, 1
      %p181 = por %p179, %p180
      %p183 = scmp.ne.s32.totalorder %s168, %s182
      %p184 = scmp.eq.s32.totalorder %s22, 0
      %p185 = por %p183, %p184
      %s186 = ssub.s32 %s16, %s23
      %p187 = scmp.eq.s32.totalorder %s186, 0
      %s189 = sadd.s32 %s188, 1
      %s190 = scalar_select %p187, %s188, %s189
      %p193 = pneg %p187
      %p194 = scmp.eq.s32.totalorder %s16, 1
      %p195 = por %p193, %p194
      %p196 = scmp.ne.s32.totalorder %s188, %s191
      %p197 = scmp.eq.s32.totalorder %s16, 0
      %p198 = por %p196, %p197
      %p199 = scmp.ne.s32.totalorder %s188, %s191
      %p200 = scmp.eq.s32.totalorder %s21, 1
      %p201 = por %p199, %p200
      %p202 = scmp.ne.s32.totalorder %s191, %s192
      %p203 = scmp.eq.s32.totalorder %s21, 0
      %p204 = por %p202, %p203
      %p205 = scmp.ne.s32.totalorder %s191, %s192
      %p206 = scmp.eq.s32.totalorder %s22, 1
      %p207 = por %p205, %p206
      %p209 = scmp.ne.s32.totalorder %s192, %s208
      %p210 = scmp.eq.s32.totalorder %s22, 0
      %p211 = por %p209, %p210
      %p212 = scmp.le.s32.totalorder 1, %s16
      %p213 = scmp.lt.s32.totalorder %s16, 3
      %p214 = pnand %p212, %p213
      %p215 = pneg %p214
      // Predicated region
      $region9: #{tpu_custom_call.1} parent=5 // pred_check
        _
      $region10: #{tpu_custom_call.1} parent=5 // pred_check_branch
        %217 = sbr.rel (%p214) target = $region12
      $region11: #{tpu_custom_call.1} parent=5 // pred_region
        %s218 = ssub.s32 %s16, 1
        // Predicated region
        $region13: #{tpu_custom_call.1} parent=11 // pred_check
          %p219 = pneg %p115
        $region14: #{tpu_custom_call.1} parent=11 // pred_check_branch
          %221 = sbr.rel (%p219) target = $region16
        $region15: #{tpu_custom_call.1} parent=11 // pred_region
          _
        $region16: #{tpu_custom_call.1} parent=11 // pred_fallthru
          _
        // Predicated region
        $region17: #{tpu_custom_call.1} parent=11 // pred_check
          %p222 = pneg %p136
        $region18: #{tpu_custom_call.1} parent=11 // pred_check_branch
          %224 = sbr.rel (%p222) target = $region20
        $region19: #{tpu_custom_call.1} parent=11 // pred_region
          _
        $region20: #{tpu_custom_call.1} parent=11 // pred_fallthru
          _
        // Predicated region
        $region21: #{tpu_custom_call.1} parent=11 // pred_check
          %p225 = pneg %p157
        $region22: #{tpu_custom_call.1} parent=11 // pred_check_branch
          %227 = sbr.rel (%p225) target = $region24
        $region23: #{tpu_custom_call.1} parent=11 // pred_region
          _
        $region24: #{tpu_custom_call.1} parent=11 // pred_fallthru
          _
        // Predicated region
        $region25: #{tpu_custom_call.1} parent=11 // pred_check
          %p228 = pneg %p178
        $region26: #{tpu_custom_call.1} parent=11 // pred_check_branch
          %230 = sbr.rel (%p228) target = $region28
        $region27: #{tpu_custom_call.1} parent=11 // pred_region
          _
        $region28: #{tpu_custom_call.1} parent=11 // pred_fallthru
          _
      $region12: #{tpu_custom_call.1} parent=5 // pred_fallthru
        _
      %p231 = scmp.lt.s32.totalorder %s16, 2
      // Predicated region
      $region29: #{tpu_custom_call.1} parent=5 // pred_check
        %p232 = pneg %p231
      $region30: #{tpu_custom_call.1} parent=5 // pred_check_branch
        %234 = sbr.rel (%p232) target = $region32
      $region31: #{tpu_custom_call.1} parent=5 // pred_region
        // Predicated region
        $region33: #{tpu_custom_call.1} parent=31 // pred_check
          %p235 = pneg %p36
        $region34: #{tpu_custom_call.1} parent=31 // pred_check_branch
          %237 = sbr.rel (%p235) target = $region36
        $region35: #{tpu_custom_call.1} parent=31 // pred_region
          %p238 = scmp.lt.s32.totalorder %s16, 1
          %s239 = scalar_select %p238, %s16, 1
          %s240 = smul.addr %s239, 8
          %s241 = scalar_lea.vmem %s0, %s240
        $region36: #{tpu_custom_call.1} parent=31 // pred_fallthru
          _
        // Predicated region
        $region37: #{tpu_custom_call.1} parent=31 // pred_check
          %p242 = pneg %p62
        $region38: #{tpu_custom_call.1} parent=31 // pred_check_branch
          %244 = sbr.rel (%p242) target = $region40
        $region39: #{tpu_custom_call.1} parent=31 // pred_region
          %p245 = scmp.lt.s32.totalorder %s16, 1
          %s246 = scalar_select %p245, %s16, 1
          %s247 = smul.addr %s246, 8
          %s248 = scalar_lea.vmem %s1, %s247
        $region40: #{tpu_custom_call.1} parent=31 // pred_fallthru
          _
        // Predicated region
        $region41: #{tpu_custom_call.1} parent=31 // pred_check
          %p249 = pneg %p88
        $region42: #{tpu_custom_call.1} parent=31 // pred_check_branch
          %251 = sbr.rel (%p249) target = $region44
        $region43: #{tpu_custom_call.1} parent=31 // pred_region
          %p252 = scmp.lt.s32.totalorder %s16, 1
          %s253 = scalar_select %p252, %s16, 1
          %s254 = smul.addr %s253, 8
          %s255 = scalar_lea.vmem %s2, %s254
        $region44: #{tpu_custom_call.1} parent=31 // pred_fallthru
          _
      $region32: #{tpu_custom_call.1} parent=5 // pred_fallthru
        _
      %p256 = scmp.le.s32.totalorder 1, %s16
      %p257 = scmp.lt.s32.totalorder %s16, 3
      %p258 = pnand %p256, %p257
      %p259 = pneg %p258
      // Predicated region
      $region45: #{tpu_custom_call.1} parent=5 // pred_check
        _
      $region46: #{tpu_custom_call.1} parent=5 // pred_check_branch
        %261 = sbr.rel (%p258) target = $region48
      $region47: #{tpu_custom_call.1} parent=5 // pred_region
        %s262 = ssub.s32 %s16, 1
        %p263 = scmp.lt.s32.totalorder %s21, 1
        %s264 = scalar_select %p263, %s21, 1
        %s265 = smul.addr %s264, 8
        %s266 = scalar_lea.vmem %s0, %s265
        %p267 = pneg %p42
        %p268 = pneg %p39
        %p269 = scmp.lt.s32.totalorder %s21, 1
        %s270 = scalar_select %p269, %s21, 1
        %s271 = smul.addr %s270, 8
        %s272 = scalar_lea.vmem %s1, %s271
        %p273 = pneg %p68
        %p274 = pneg %p65
        %p275 = scmp.lt.s32.totalorder %s21, 1
        %s276 = scalar_select %p275, %s21, 1
        %s277 = smul.addr %s276, 8
        %s278 = scalar_lea.vmem %s2, %s277
        %p279 = pneg %p94
        %p280 = pneg %p91
        %p281 = pneg %p115
        %p282 = pneg %p112
        %p283 = pneg %p136
        %p284 = pneg %p133
        %p285 = pneg %p157
        %p286 = pneg %p154
        %p287 = pneg %p178
        %p288 = pneg %p175
        %p289 = pneg %p204
        %p290 = pneg %p201
        %s291 = sand.u32 %s191, 1
        %s292 = scalar_lea.sflag [#allocation3], %s291
        %s293 = sand.u32 %s191, 1
        %s294 = smul.addr %s293, 8
        %s295 = scalar_lea.vmem [#allocation2], %s294
        %p296 = scmp.lt.s32.totalorder %s21, 1
        %s297 = scalar_select %p296, %s21, 1
        %s298 = smul.addr %s297, 8
        %s299 = scalar_lea.vmem %s0, %s298
        %p300 = scmp.lt.s32.totalorder %s21, 1
        %s301 = scalar_select %p300, %s21, 1
        %s302 = smul.addr %s301, 8
        %s303 = scalar_lea.vmem %s1, %s302
        %p304 = scmp.lt.s32.totalorder %s21, 1
        %s305 = scalar_select %p304, %s21, 1
        %s306 = smul.addr %s305, 8
        %s307 = scalar_lea.vmem %s2, %s306
        %v308 = vld [vmem:[%s299] sm:$0xff]
        %v309 = vld [vmem:[%s303] sm:$0xff]
        %311 = vrot.lane.b32.xlu0 %v309, 32
        %v312 = vpop.permute.xlu0 %311
        %vm314 = vcmask 261120
        %v315 = vsel %vm314, %v308, %v312
        %v316 = vld [vmem:[%s3] sm:$0xff]
        %v317 = vld [vmem:[%s3 + $0x8] sm:$0xff]
        %v318 = vld [vmem:[%s3 + $0x10] sm:$0xff]
        %v319 = vld [vmem:[%s3 + $0x18] sm:$0xff]
        %v320 = vld [vmem:[%s3 + $0x20] sm:$0xff]
        %v321 = vld [vmem:[%s3 + $0x28] sm:$0xff]
        %v322 = vld [vmem:[%s3 + $0x30] sm:$0xff]
        %v323 = vld [vmem:[%s3 + $0x38] sm:$0xff]
        %v324 = vld [vmem:[%s4] sm:$0x1]
        %v326 = vlaneseq
        %v327 = vshrl.u32 %v326, 7
        %v328 = vsub.s32 0, %v327
        %v329 = vrot.slane %v324, %v328
        %vm331 = vcmask 523264
        %v333 = vsel %vm331, %v315, 0
        %335 = vmatprep.subr.mxu0 0.0
        %336 = vmatpush1.msra.mxu0 0.0
        %337 = vmatprep.subr.mxu0 0.0
        %338 = vmatpush1.msra.mxu0 0.0
        %339 = vmatprep.subr.mxu0 0.0
        %340 = vmatpush1.msra.mxu0 0.0
        %341 = vmatprep.subr.mxu0 0.0
        %342 = vmatpush1.msra.mxu0 0.0
        %343 = vmatprep.subr.mxu0 0.0
        %344 = vmatpush1.msra.mxu0 0.0
        %345 = vmatprep.subr.mxu0 0.0
        %346 = vmatpush1.msra.mxu0 0.0
        %347 = vmatprep.subr.mxu0 0.0
        %348 = vmatpush1.msra.mxu0 0.0
        %349 = vmatprep.subr.mxu0 0.0
        %350 = vmatpush1.msra.mxu0 0.0
        %351 = vmatprep.subr.mxu0 0.0
        %352 = vmatpush1.msra.mxu0 %v323
        %353 = vmatprep.subr.mxu0 0.0
        %354 = vmatpush1.msra.mxu0 %v322
        %355 = vmatprep.subr.mxu0 0.0
        %356 = vmatpush1.msra.mxu0 %v321
        %357 = vmatprep.subr.mxu0 0.0
        %358 = vmatpush1.msra.mxu0 %v320
        %359 = vmatprep.subr.mxu0 0.0
        %360 = vmatpush1.msra.mxu0 %v319
        %361 = vmatprep.subr.mxu0 0.0
        %362 = vmatpush1.msra.mxu0 %v318
        %363 = vmatprep.subr.mxu0 0.0
        %364 = vmatpush1.msra.mxu0 %v317
        %365 = vmatprep.subr.mxu0 0.0
        %366 = vmatpush1.msra.mxu0 %v316
        %367 = vmatprep.subr.mxu0 0.0
        %368 = vmatpush2.msra.mxu0 0.0
        %369 = vmatprep.subr.mxu0 0.0
        %370 = vmatpush2.msra.mxu0 0.0
        %371 = vmatprep.subr.mxu0 0.0
        %372 = vmatpush2.msra.mxu0 0.0
        %373 = vmatprep.subr.mxu0 0.0
        %374 = vmatpush2.msra.mxu0 0.0
        %375 = vmatprep.subr.mxu0 0.0
        %376 = vmatpush2.msra.mxu0 0.0
        %377 = vmatprep.subr.mxu0 0.0
        %378 = vmatpush2.msra.mxu0 0.0
        %379 = vmatprep.subr.mxu0 0.0
        %380 = vmatpush2.msra.mxu0 0.0
        %381 = vmatprep.subr.mxu0 0.0
        %382 = vmatpush2.msra.mxu0 0.0
        %383 = vmatprep.subr.mxu0 0.0
        %384 = vmatpush2.msra.mxu0 0.0
        %385 = vmatprep.subr.mxu0 0.0
        %386 = vmatpush2.msra.mxu0 0.0
        %387 = vmatprep.subr.mxu0 0.0
        %388 = vmatpush2.msra.mxu0 0.0
        %389 = vmatprep.subr.mxu0 0.0
        %390 = vmatpush2.msra.mxu0 0.0
        %391 = vmatprep.subr.mxu0 0.0
        %392 = vmatpush2.msra.mxu0 0.0
        %393 = vmatprep.subr.mxu0 0.0
        %394 = vmatpush2.msra.mxu0 0.0
        %395 = vmatprep.subr.mxu0 0.0
        %396 = vmatpush2.msra.mxu0 0.0
        %397 = vmatprep.subr.mxu0 0.0
        %398 = vmatpush2.msra.mxu0 0.0
        %399 = vmatprep.mubr.f32.mxu0 0.0
        %400 = vmatmul.mubr.f32.gmra.mxu0 %v333
        %v401 = vpop.f32.mrf.mxu0
        %v402 = vadd.f32 %v329, %v401
        %v403 = vpop.f32.mrf.mxu0
        %404 = vdwg.mxu0
        %v405 = vld [vmem:[%s307] sm:$0xff]
        %407 = vrot.lane.b32.xlu0 %v402, 32
        %v408 = vpop.permute.xlu0 %407
        %v410 = vsel %vm314, %v405, %v408
        %v411 = vld [vmem:[%s5] sm:$0xff]
        %v412 = vld [vmem:[%s5 + $0x8] sm:$0xff]
        %v413 = vld [vmem:[%s5 + $0x10] sm:$0xff]
        %v414 = vld [vmem:[%s5 + $0x18] sm:$0xff]
        %v415 = vld [vmem:[%s5 + $0x20] sm:$0xff]
        %v416 = vld [vmem:[%s5 + $0x28] sm:$0xff]
        %v417 = vld [vmem:[%s5 + $0x30] sm:$0xff]
        %v418 = vld [vmem:[%s5 + $0x38] sm:$0xff]
        %v419 = vld [vmem:[%s6] sm:$0x1]
        %v421 = vlaneseq
        %v422 = vshrl.u32 %v421, 7
        %v423 = vsub.s32 0, %v422
        %v424 = vrot.slane %v419, %v423
        %v427 = vsel %vm331, %v410, 0
        %429 = vmatprep.subr.mxu0 0.0
        %430 = vmatpush1.msra.mxu0 0.0
        %431 = vmatprep.subr.mxu0 0.0
        %432 = vmatpush1.msra.mxu0 0.0
        %433 = vmatprep.subr.mxu0 0.0
        %434 = vmatpush1.msra.mxu0 0.0
        %435 = vmatprep.subr.mxu0 0.0
        %436 = vmatpush1.msra.mxu0 0.0
        %437 = vmatprep.subr.mxu0 0.0
        %438 = vmatpush1.msra.mxu0 0.0
        %439 = vmatprep.subr.mxu0 0.0
        %440 = vmatpush1.msra.mxu0 0.0
        %441 = vmatprep.subr.mxu0 0.0
        %442 = vmatpush1.msra.mxu0 0.0
        %443 = vmatprep.subr.mxu0 0.0
        %444 = vmatpush1.msra.mxu0 0.0
        %445 = vmatprep.subr.mxu0 0.0
        %446 = vmatpush1.msra.mxu0 %v418
        %447 = vmatprep.subr.mxu0 0.0
        %448 = vmatpush1.msra.mxu0 %v417
        %449 = vmatprep.subr.mxu0 0.0
        %450 = vmatpush1.msra.mxu0 %v416
        %451 = vmatprep.subr.mxu0 0.0
        %452 = vmatpush1.msra.mxu0 %v415
        %453 = vmatprep.subr.mxu0 0.0
        %454 = vmatpush1.msra.mxu0 %v414
        %455 = vmatprep.subr.mxu0 0.0
        %456 = vmatpush1.msra.mxu0 %v413
        %457 = vmatprep.subr.mxu0 0.0
        %458 = vmatpush1.msra.mxu0 %v412
        %459 = vmatprep.subr.mxu0 0.0
        %460 = vmatpush1.msra.mxu0 %v411
        %461 = vmatprep.subr.mxu0 0.0
        %462 = vmatpush2.msra.mxu0 0.0
        %463 = vmatprep.subr.mxu0 0.0
        %464 = vmatpush2.msra.mxu0 0.0
        %465 = vmatprep.subr.mxu0 0.0
        %466 = vmatpush2.msra.mxu0 0.0
        %467 = vmatprep.subr.mxu0 0.0
        %468 = vmatpush2.msra.mxu0 0.0
        %469 = vmatprep.subr.mxu0 0.0
        %470 = vmatpush2.msra.mxu0 0.0
        %471 = vmatprep.subr.mxu0 0.0
        %472 = vmatpush2.msra.mxu0 0.0
        %473 = vmatprep.subr.mxu0 0.0
        %474 = vmatpush2.msra.mxu0 0.0
        %475 = vmatprep.subr.mxu0 0.0
        %476 = vmatpush2.msra.mxu0 0.0
        %477 = vmatprep.subr.mxu0 0.0
        %478 = vmatpush2.msra.mxu0 0.0
        %479 = vmatprep.subr.mxu0 0.0
        %480 = vmatpush2.msra.mxu0 0.0
        %481 = vmatprep.subr.mxu0 0.0
        %482 = vmatpush2.msra.mxu0 0.0
        %483 = vmatprep.subr.mxu0 0.0
        %484 = vmatpush2.msra.mxu0 0.0
        %485 = vmatprep.subr.mxu0 0.0
        %486 = vmatpush2.msra.mxu0 0.0
        %487 = vmatprep.subr.mxu0 0.0
        %488 = vmatpush2.msra.mxu0 0.0
        %489 = vmatprep.subr.mxu0 0.0
        %490 = vmatpush2.msra.mxu0 0.0
        %491 = vmatprep.subr.mxu0 0.0
        %492 = vmatpush2.msra.mxu0 0.0
        %493 = vmatprep.mubr.f32.mxu0 0.0
        %494 = vmatmul.mubr.f32.gmra.mxu0 %v427
        %v495 = vpop.f32.mrf.mxu0
        %v496 = vadd.f32 %v424, %v495
        %v497 = vpop.f32.mrf.mxu0
        %498 = vdwg.mxu0
        %v499 = vmax.f32 %v496, 0.0
        %501 = vrot.lane.b32.xlu0 %v499, 32
        %v502 = vpop.permute.xlu0 %501
        %v504 = vsel %vm314, %v402, %v502
        %vm505 = vcmask 392192
        %506 = vst.msk [vmem:[%s295] sm:$0xff] %vm505, %v504
        %s507 = sand.u32 %s191, 1
        %s508 = scalar_lea.sflag [#allocation3], %s507
        %s509 = sand.u32 %s191, 1
        %s510 = smul.addr %s509, 8
        %s511 = scalar_lea.vmem [#allocation2], %s510
        // Predicated region
        $region49: #{tpu_custom_call.1} parent=47 // pred_check
          %p512 = pneg %p201
        $region50: #{tpu_custom_call.1} parent=47 // pred_check_branch
          %514 = sbr.rel (%p512) target = $region52
        $region51: #{tpu_custom_call.1} parent=47 // pred_region
          %s516 = ssub.s32 128, 128
          %517 = vsyncadd %s508, %s516
          %s518 = smul.addr %s21, 128
          %s519 = scalar_lea.hbm %s7, %s518
          %s521 = sshll.u32 %s511, 4
          %s522 = int_to_ptr.vmem [resolvable:$true] %s521
          %524 = dma.vmem_to_hbm [thread:$0]  %s522, 128, %s519, %s508
        $region52: #{tpu_custom_call.1} parent=47 // pred_fallthru
          _
      $region48: #{tpu_custom_call.1} parent=5 // pred_fallthru
        _
      %p525 = scmp.le.s32.totalorder 2, %s16
      // Predicated region
      $region53: #{tpu_custom_call.1} parent=5 // pred_check
        %p526 = pneg %p525
      $region54: #{tpu_custom_call.1} parent=5 // pred_check_branch
        %528 = sbr.rel (%p526) target = $region56
      $region55: #{tpu_custom_call.1} parent=5 // pred_region
        %s529 = ssub.s32 %s16, 2
        // Predicated region
        $region57: #{tpu_custom_call.1} parent=55 // pred_check
          %p530 = pneg %p207
        $region58: #{tpu_custom_call.1} parent=55 // pred_check_branch
          %532 = sbr.rel (%p530) target = $region60
        $region59: #{tpu_custom_call.1} parent=55 // pred_region
          %s533 = sand.u32 %s192, 1
          %s534 = scalar_lea.sflag [#allocation3], %s533
          %s535 = sand.u32 %s192, 1
          %s536 = smul.addr %s535, 8
          %s537 = scalar_lea.vmem [#allocation2], %s536
          %538 = dma.done %s534, 128
        $region60: #{tpu_custom_call.1} parent=55 // pred_fallthru
          _
      $region56: #{tpu_custom_call.1} parent=5 // pred_fallthru
        _
    $region6: #{tpu_custom_call.1} parent=1 // loop_footer
      %s20 = sadd.s32 1, %s16
    $region7: #{tpu_custom_call.1} parent=1 // loop_footer_branch
      %15 = sbr.rel target = $region3
    $region8: #{tpu_custom_call.1} parent=1 // loop_exit
      _
    %539 = vsyncpa [#allocation3], 1
    %s540 = scalar_lea.sflag [#allocation3], 1
    %541 = vsyncpa %s540, 1

</llo_original>
